<compile_context>
chip_gen: v7x
topology: tpu7x:2x2x1
jax: 0.10.0
libtpu: 0.0.40
codegen_flags: <defaults>
</compile_context>

<pallas_src>
import functools

import jax
import jax.numpy as jnp
from jax.experimental import pallas as pl
from jax.experimental.pallas import tpu as pltpu

# alpha = beta = 1 in the module under test, so the scalar multiplies are
# folded away entirely (only the fused 2*a bias init remains).


def _addmm_kernel(a_ref, b_ref, c_ref, o_ref, acc_ref):
    k = pl.program_id(2)

    @pl.when(k == 0)
    def _():
        # Fuse the (a + a) bias directly into the reduction init: 2*a in f32.
        acc_ref[...] = 2.0 * a_ref[...].astype(jnp.float32)

    acc_ref[...] += jnp.dot(
        b_ref[...], c_ref[...], preferred_element_type=jnp.float32
    )

    @pl.when(k == pl.num_programs(2) - 1)
    def _():
        o_ref[...] = acc_ref[...].astype(o_ref.dtype)


def _round_up(x, m):
    return ((x + m - 1) // m) * m


@functools.partial(jax.jit, static_argnames=("tm", "tn", "tk"))
def simple_addmm(a, b, c, *, tm=256, tn=256, tk=256):
    """(a + a) + b @ c  with f32 accumulation (PyTorch addmm, alpha=beta=1)."""
    M, K = b.shape
    K2, N = c.shape
    assert K == K2 and a.shape == (M, N), (a.shape, b.shape, c.shape)

    # Pad to (8, 128)-aligned shapes so tiles are lane-dense (no masked
    # vst) and the MXU never sees a partially-filled tile.
    Mp = _round_up(M, 8)
    Np = _round_up(N, 128)
    Kp = _round_up(K, 128)

    # Clamp tiles to the (padded) problem, then make sure tiles divide evenly.
    tm = min(tm, Mp)
    tn = min(tn, Np)
    tk = min(tk, Kp)
    Mp = _round_up(Mp, tm)
    Np = _round_up(Np, tn)
    Kp = _round_up(Kp, tk)

    a_p = a if (Mp, Np) == (M, N) else jnp.pad(a, ((0, Mp - M), (0, Np - N)))
    b_p = b if (Mp, Kp) == (M, K) else jnp.pad(b, ((0, Mp - M), (0, Kp - K)))
    c_p = c if (Kp, Np) == (K, N) else jnp.pad(c, ((0, Kp - K), (0, Np - N)))

    grid = (Mp // tm, Np // tn, Kp // tk)

    itemsize = jnp.dtype(a.dtype).itemsize
    cost = pl.CostEstimate(
        flops=2 * Mp * Np * Kp,
        transcendentals=0,
        bytes_accessed=itemsize * (Mp * Kp + Kp * Np + 2 * Mp * Np),
    )

    out_p = pl.pallas_call(
        _addmm_kernel,
        out_shape=jax.ShapeDtypeStruct((Mp, Np), a.dtype),
        grid_spec=pltpu.PrefetchScalarGridSpec(
            num_scalar_prefetch=0,
            grid=grid,
            in_specs=[
                pl.BlockSpec((tm, tn), lambda i, j, k: (i, j)),  # a (bias)
                pl.BlockSpec((tm, tk), lambda i, j, k: (i, k)),  # b (lhs)
                pl.BlockSpec((tk, tn), lambda i, j, k: (k, j)),  # c (rhs)
            ],
            out_specs=pl.BlockSpec((tm, tn), lambda i, j, k: (i, j)),
            scratch_shapes=[pltpu.VMEM((tm, tn), jnp.float32)],
        ),
        compiler_params=pltpu.CompilerParams(
            dimension_semantics=("parallel", "parallel", "arbitrary"),
        ),
        cost_estimate=cost,
    )(a_p, b_p, c_p)

    if (Mp, Np) == (M, N):
        return out_p
    return out_p[:M, :N]


if __name__ == "__main__":
    key = jax.random.PRNGKey(0)
    k_a, k_b, k_c = jax.random.split(key, 3)

    # Small shapes consistent with the torch_glow addmm test (a:(M,N), b:(M,K), c:(K,N)).
    M, K, N = 8, 16, 32
    a = jax.random.normal(k_a, (M, N), dtype=jnp.float32)
    b = jax.random.normal(k_b, (M, K), dtype=jnp.float32)
    c = jax.random.normal(k_c, (K, N), dtype=jnp.float32)

    out = simple_addmm(a, b, c)
    jax.block_until_ready(out)

    # Reference check against pure-JAX semantics of (a + a).addmm(b, c).
    ref = (a + a) + b @ c
    assert out.shape == ref.shape, (out.shape, ref.shape)
    assert jnp.allclose(out, ref, atol=1e-5, rtol=1e-5), "mismatch vs reference"

    # Sanity check at a larger, tile-exercising shape (multiple grid steps).
    M2, K2, N2 = 384, 512, 640
    a2 = jax.random.normal(k_a, (M2, N2), dtype=jnp.float32)
    b2 = jax.random.normal(k_b, (M2, K2), dtype=jnp.float32)
    c2 = jax.random.normal(k_c, (K2, N2), dtype=jnp.float32)
    out2 = simple_addmm(a2, b2, c2)
    jax.block_until_ready(out2)
    ref2 = (a2 + a2) + b2 @ c2
    assert jnp.allclose(out2, ref2, atol=1e-3, rtol=1e-3), "mismatch (large)"

    print("KERNEL_OK")
</pallas_src>

<mosaic_0001>
module attributes {stable_mosaic.version = 11 : i64} {
  func.func @_addmm_kernel(%arg0: i32, %arg1: i32, %arg2: i32, %arg3: memref<8x128xf32, #tpu.memory_space<vmem>>, %arg4: memref<8x128xf32, #tpu.memory_space<vmem>>, %arg5: memref<128x128xf32, #tpu.memory_space<vmem>>, %arg6: memref<8x128xf32, #tpu.memory_space<vmem>>, %arg7: memref<8x128xf32, #tpu.memory_space<vmem>>) attributes {dimension_semantics = [#tpu.dimension_semantics<parallel>, #tpu.dimension_semantics<parallel>, #tpu.dimension_semantics<arbitrary>], iteration_bounds = array<i64: 1, 1, 1>, scalar_prefetch = 0 : i64, scratch_operands = 1 : i64, tpu.core_type = #tpu.core_type<tc>, window_params = [{transform_indices = @transform_0, window_bounds = array<i64: 8, 128>}, {transform_indices = @transform_1, window_bounds = array<i64: 8, 128>}, {transform_indices = @transform_2, window_bounds = array<i64: 128, 128>}, {transform_indices = @transform_3, window_bounds = array<i64: 8, 128>}]} {
    %c0_i32 = arith.constant 0 : i32
    %0 = arith.cmpi eq, %arg2, %c0_i32 : i32
    %1 = arith.extui %0 : i1 to i32
    %c0_i32_0 = arith.constant 0 : i32
    %2 = arith.cmpi ne, %1, %c0_i32_0 : i32
    scf.if %2 {
      %c0_10 = arith.constant 0 : index
      %c0_11 = arith.constant 0 : index
      %12 = vector.load %arg3[%c0_10, %c0_11] : memref<8x128xf32, #tpu.memory_space<vmem>>, vector<8x128xf32>
      %cst_12 = arith.constant 2.000000e+00 : f32
      %13 = vector.broadcast %cst_12 : f32 to vector<8x128xf32>
      %14 = arith.mulf %13, %12 : vector<8x128xf32>
      %c0_13 = arith.constant 0 : index
      %c0_14 = arith.constant 0 : index
      %15 = vector.load %arg7[%c0_13, %c0_14] : memref<8x128xf32, #tpu.memory_space<vmem>>, vector<8x128xf32>
      tpu.vector_store %arg7[%c0_13, %c0_14], %14 {strides = array<i32>} : memref<8x128xf32, #tpu.memory_space<vmem>>, vector<8x128xf32>,
    } else {
    }
    %c0 = arith.constant 0 : index
    %c0_1 = arith.constant 0 : index
    %3 = vector.load %arg7[%c0, %c0_1] : memref<8x128xf32, #tpu.memory_space<vmem>>, vector<8x128xf32>
    %c0_2 = arith.constant 0 : index
    %c0_3 = arith.constant 0 : index
    %4 = vector.load %arg4[%c0_2, %c0_3] : memref<8x128xf32, #tpu.memory_space<vmem>>, vector<8x128xf32>
    %c0_4 = arith.constant 0 : index
    %c0_5 = arith.constant 0 : index
    %5 = vector.load %arg5[%c0_4, %c0_5] : memref<128x128xf32, #tpu.memory_space<vmem>>, vector<128x128xf32>
    %cst = arith.constant dense<0.000000e+00> : vector<8x128xf32>
    %6 = tpu.matmul %4, %5, %cst {dimension_numbers = #tpu.dot_dimension_numbers<[1], [0], [0], [1], [0, 0, 1, 1], [], []>} : vector<8x128xf32>, vector<128x128xf32>, vector<8x128xf32> -> vector<8x128xf32>
    %7 = arith.addf %3, %6 : vector<8x128xf32>
    %c0_6 = arith.constant 0 : index
    %c0_7 = arith.constant 0 : index
    %8 = vector.load %arg7[%c0_6, %c0_7] : memref<8x128xf32, #tpu.memory_space<vmem>>, vector<8x128xf32>
    tpu.vector_store %arg7[%c0_6, %c0_7], %7 {strides = array<i32>} : memref<8x128xf32, #tpu.memory_space<vmem>>, vector<8x128xf32>,
    %c0_i32_8 = arith.constant 0 : i32
    %9 = arith.cmpi eq, %arg2, %c0_i32_8 : i32
    %10 = arith.extui %9 : i1 to i32
    %c0_i32_9 = arith.constant 0 : i32
    %11 = arith.cmpi ne, %10, %c0_i32_9 : i32
    scf.if %11 {
      %c0_10 = arith.constant 0 : index
      %c0_11 = arith.constant 0 : index
      %12 = vector.load %arg7[%c0_10, %c0_11] : memref<8x128xf32, #tpu.memory_space<vmem>>, vector<8x128xf32>
      %c0_12 = arith.constant 0 : index
      %c0_13 = arith.constant 0 : index
      %13 = vector.load %arg6[%c0_12, %c0_13] : memref<8x128xf32, #tpu.memory_space<vmem>>, vector<8x128xf32>
      tpu.vector_store %arg6[%c0_12, %c0_13], %12 {strides = array<i32>} : memref<8x128xf32, #tpu.memory_space<vmem>>, vector<8x128xf32>,
    } else {
    }
    return
  }
  func.func @transform_0(%arg0: i32, %arg1: i32, %arg2: i32) -> (i32, i32) {
    %c0_i32 = arith.constant 0 : i32
    return %arg0, %arg1 : i32, i32
  }
  func.func @transform_1(%arg0: i32, %arg1: i32, %arg2: i32) -> (i32, i32) {
    %c0_i32 = arith.constant 0 : i32
    return %arg0, %arg2 : i32, i32
  }
  func.func @transform_2(%arg0: i32, %arg1: i32, %arg2: i32) -> (i32, i32) {
    %c0_i32 = arith.constant 0 : i32
    return %arg2, %arg1 : i32, i32
  }
  func.func @transform_3(%arg0: i32, %arg1: i32, %arg2: i32) -> (i32, i32) {
    %c0_i32 = arith.constant 0 : i32
    return %arg0, %arg1 : i32, i32
  }
}

</mosaic_0001>

<llo_original>
// kernel: simple_addmm.1
$region0: #{simple_addmm.1}
  #allocation0 [shape = 'u32[]', space=smem, size = 0x4, offset = 0x4, fixed_abs, tag = 'smem constant byte address 0x4 - core index']
  #allocation1 [shape = 'u32[144,128]{1,0:T(1,128)}', space=vmem, size = 0x12000, scoped, tag = 'internal scratch']
  #allocation2 [shape = 'f32[8,128]{1,0:T(8,128)}', space=vmem, size = 0x1000, scoped, tag = 'scratch operand']
  %s0 = inlined_call_operand.vmem [shape: f32[8,128], index: 0, kind: input, shape index: {}]
  %s1 = inlined_call_operand.vmem [shape: f32[8,128], index: 1, kind: input, shape index: {}]
  %s2 = inlined_call_operand.vmem [shape: f32[128,128], index: 2, kind: input, shape index: {}]
  %s3 = inlined_call_operand.hbm [shape: f32[8,128], index: 3, kind: output, shape index: {}]
  %s4 = sld [smem:[#allocation0]]
  $region30: #{simple_addmm.1} parent=0
    _
  %s6 = ssub.s32 1, %s4
  %s7 = scalar_select 0, %s6, %s4
  $region1: #{simple_addmm.1} parent=0
    #allocation3 [shape = 'u8[4096]{0}', space=vmem, size = 0x1000, scoped, tag = 'output window, operand 0, single buffered']
    #allocation4 [shape = 's32[1]{0}', space=sflag, size = 0x4, scoped, tag = 'scoped memory for simple_addmm.1']
    %8 = vsyncpa [#allocation4], 0
    // Predicated region
    $region2: #{simple_addmm.1} parent=1 // pred_check
      _
    $region3: #{simple_addmm.1} parent=1 // pred_check_branch
      %10 = sbr.rel (0) target = $region5
    $region4: #{simple_addmm.1} parent=1 // pred_region
      _
    $region5: #{simple_addmm.1} parent=1 // pred_fallthru
      _
    // Predicated region
    $region6: #{simple_addmm.1} parent=1 // pred_check
      _
    $region7: #{simple_addmm.1} parent=1 // pred_check_branch
      %12 = sbr.rel (0) target = $region9
    $region8: #{simple_addmm.1} parent=1 // pred_region
      _
    $region9: #{simple_addmm.1} parent=1 // pred_fallthru
      _
    // Predicated region
    $region10: #{simple_addmm.1} parent=1 // pred_check
      _
    $region11: #{simple_addmm.1} parent=1 // pred_check_branch
      %14 = sbr.rel (0) target = $region13
    $region12: #{simple_addmm.1} parent=1 // pred_region
      _
    $region13: #{simple_addmm.1} parent=1 // pred_fallthru
      _
    %p15 = scmp.eq.s32.totalorder 0, 0
    // Predicated region
    $region14: #{simple_addmm.1} parent=1 // pred_check
      %p16 = pneg %p15
    $region15: #{simple_addmm.1} parent=1 // pred_check_branch
      %18 = sbr.rel (%p16) target = $region17
    $region16: #{simple_addmm.1} parent=1 // pred_region
      %v19 = vld [vmem:[%s0] sm:$0xff]
      %v20 = vmul.f32 %v19, 2.0
      %21 = vst [vmem:[#allocation2] sm:$0xff] %v20
    $region17: #{simple_addmm.1} parent=1 // pred_fallthru
      _
    %v22 = vld [vmem:[#allocation2] sm:$0xff]
    %v23 = vld [vmem:[%s1] sm:$0xff]
    %v24 = vld [vmem:[%s2] sm:$0xff]
    %v25 = vld [vmem:[%s2 + $0x8] sm:$0xff]
    %v26 = vld [vmem:[%s2 + $0x10] sm:$0xff]
    %v27 = vld [vmem:[%s2 + $0x18] sm:$0xff]
    %v28 = vld [vmem:[%s2 + $0x20] sm:$0xff]
    %v29 = vld [vmem:[%s2 + $0x28] sm:$0xff]
    %v30 = vld [vmem:[%s2 + $0x30] sm:$0xff]
    %v31 = vld [vmem:[%s2 + $0x38] sm:$0xff]
    %v32 = vld [vmem:[%s2 + $0x40] sm:$0xff]
    %v33 = vld [vmem:[%s2 + $0x48] sm:$0xff]
    %v34 = vld [vmem:[%s2 + $0x50] sm:$0xff]
    %v35 = vld [vmem:[%s2 + $0x58] sm:$0xff]
    %v36 = vld [vmem:[%s2 + $0x60] sm:$0xff]
    %v37 = vld [vmem:[%s2 + $0x68] sm:$0xff]
    %v38 = vld [vmem:[%s2 + $0x70] sm:$0xff]
    %v39 = vld [vmem:[%s2 + $0x78] sm:$0xff]
    %40 = vmatprep.subr.mxu0 0.0
    %41 = vmatpush1.msra.mxu0 %v24
    %42 = vmatprep.subr.mxu0 0.0
    %43 = vmatpush1.msra.mxu0 %v25
    %44 = vmatprep.subr.mxu0 0.0
    %45 = vmatpush1.msra.mxu0 %v26
    %46 = vmatprep.subr.mxu0 0.0
    %47 = vmatpush1.msra.mxu0 %v27
    %48 = vmatprep.subr.mxu0 0.0
    %49 = vmatpush1.msra.mxu0 %v28
    %50 = vmatprep.subr.mxu0 0.0
    %51 = vmatpush1.msra.mxu0 %v29
    %52 = vmatprep.subr.mxu0 0.0
    %53 = vmatpush1.msra.mxu0 %v30
    %54 = vmatprep.subr.mxu0 0.0
    %55 = vmatpush1.msra.mxu0 %v31
    %56 = vmatprep.subr.mxu0 0.0
    %57 = vmatpush1.msra.mxu0 %v32
    %58 = vmatprep.subr.mxu0 0.0
    %59 = vmatpush1.msra.mxu0 %v33
    %60 = vmatprep.subr.mxu0 0.0
    %61 = vmatpush1.msra.mxu0 %v34
    %62 = vmatprep.subr.mxu0 0.0
    %63 = vmatpush1.msra.mxu0 %v35
    %64 = vmatprep.subr.mxu0 0.0
    %65 = vmatpush1.msra.mxu0 %v36
    %66 = vmatprep.subr.mxu0 0.0
    %67 = vmatpush1.msra.mxu0 %v37
    %68 = vmatprep.subr.mxu0 0.0
    %69 = vmatpush1.msra.mxu0 %v38
    %70 = vmatprep.subr.mxu0 0.0
    %71 = vmatpush1.msra.mxu0 %v39
    %72 = vmatprep.subr.mxu0 0.0
    %73 = vmatpush1.msra.mxu0 0.0
    %74 = vmatprep.subr.mxu0 0.0
    %75 = vmatpush1.msra.mxu0 0.0
    %76 = vmatprep.subr.mxu0 0.0
    %77 = vmatpush1.msra.mxu0 0.0
    %78 = vmatprep.subr.mxu0 0.0
    %79 = vmatpush1.msra.mxu0 0.0
    %80 = vmatprep.subr.mxu0 0.0
    %81 = vmatpush1.msra.mxu0 0.0
    %82 = vmatprep.subr.mxu0 0.0
    %83 = vmatpush1.msra.mxu0 0.0
    %84 = vmatprep.subr.mxu0 0.0
    %85 = vmatpush1.msra.mxu0 0.0
    %86 = vmatprep.subr.mxu0 0.0
    %87 = vmatpush1.msra.mxu0 0.0
    %88 = vmatprep.subr.mxu0 0.0
    %89 = vmatpush1.msra.mxu0 0.0
    %90 = vmatprep.subr.mxu0 0.0
    %91 = vmatpush1.msra.mxu0 0.0
    %92 = vmatprep.subr.mxu0 0.0
    %93 = vmatpush1.msra.mxu0 0.0
    %94 = vmatprep.subr.mxu0 0.0
    %95 = vmatpush1.msra.mxu0 0.0
    %96 = vmatprep.subr.mxu0 0.0
    %97 = vmatpush1.msra.mxu0 0.0
    %98 = vmatprep.subr.mxu0 0.0
    %99 = vmatpush1.msra.mxu0 0.0
    %100 = vmatprep.subr.mxu0 0.0
    %101 = vmatpush1.msra.mxu0 0.0
    %102 = vmatprep.subr.mxu0 0.0
    %103 = vmatpush1.msra.mxu0 0.0
    %104 = vmatprep.mubr.f32.mxu0 0.0
    %105 = vmatmul.mubr.f32.gmra.mrb[0].mxu0 %v23
    %v106 = vpop.f32.mrb[0].mxu0
    %v107 = vadd.f32 0.0, %v106
    %v108 = vpop.f32.mrb[0].mxu0
    %109 = vdwg.mxu0
    %v110 = vadd.f32 %v22, %v107
    %111 = vst [vmem:[#allocation2] sm:$0xff] %v110
    // Predicated region
    $region18: #{simple_addmm.1} parent=1 // pred_check
      %p112 = pneg %p15
    $region19: #{simple_addmm.1} parent=1 // pred_check_branch
      %114 = sbr.rel (%p112) target = $region21
    $region20: #{simple_addmm.1} parent=1 // pred_region
      %v115 = vld [vmem:[#allocation2] sm:$0xff]
      %116 = vst [vmem:[#allocation3] sm:$0xff] %v115
    $region21: #{simple_addmm.1} parent=1 // pred_fallthru
      _
    // Predicated region
    $region22: #{simple_addmm.1} parent=1 // pred_check
      _
    $region23: #{simple_addmm.1} parent=1 // pred_check_branch
      %118 = sbr.rel (0) target = $region25
    $region24: #{simple_addmm.1} parent=1 // pred_region
      %s120 = ssub.s32 128, 128
      %121 = vsyncadd [#allocation4], %s120
      %s123 = sshll.u32 [#allocation3], 4
      %s124 = int_to_ptr.vmem [resolvable:$true] %s123
      %126 = dma.vmem_to_hbm [thread:$0]  %s124, 128, %s3, [#allocation4]
    $region25: #{simple_addmm.1} parent=1 // pred_fallthru
      _
    // Predicated region
    $region26: #{simple_addmm.1} parent=1 // pred_check
      _
    $region27: #{simple_addmm.1} parent=1 // pred_check_branch
      %128 = sbr.rel (0) target = $region29
    $region28: #{simple_addmm.1} parent=1 // pred_region
      %129 = dma.done [#allocation4], 128
    $region29: #{simple_addmm.1} parent=1 // pred_fallthru
      _
    %130 = vsyncpa [#allocation4], 1

</llo_original>
